<compile_context>
chip_gen: v5e
topology: v5e:2x2
jax: 0.10.0
libtpu: 0.0.40
codegen_flags: <defaults>
</compile_context>

<pallas_src>
import functools

import jax
import jax.numpy as jnp
from jax.experimental import pallas as pl
from jax.experimental.pallas import tpu as pltpu

OUT_LANES = 128  # lane-dense output slab width (one full vreg lane tile)


def actor_critic_kernel(x_ref, w1_ref, b1_ref, w2_ref, b2_ref, out_ref, *, action_dim):
    # ---- fused first layer: [actor | critic] hidden in one MXU pass ----
    x = x_ref[...]
    h = jnp.dot(x, w1_ref[...], preferred_element_type=jnp.float32) + b1_ref[...]
    h = jnp.maximum(h, 0.0)  # ReLU

    # ---- fused (block-diagonal, zero-padded) second layer ----
    # One MXU pass -> lane-dense (Bt, 128) slab = [actor logits | value | zeros].
    z = jnp.dot(h, w2_ref[...], preferred_element_type=jnp.float32) + b2_ref[...]

    col = jax.lax.broadcasted_iota(jnp.int32, z.shape, dimension=1)
    is_logit = col < action_dim
    is_value = col == action_dim

    # Numerically-stable softmax restricted to the logit columns.
    logits = jnp.where(is_logit, z, -jnp.inf)
    m = jnp.max(logits, axis=-1, keepdims=True)
    e = jnp.where(is_logit, jnp.exp(z - m), 0.0)
    denom = jnp.sum(e, axis=-1, keepdims=True)
    probs = e * pl.reciprocal(denom, approx=False)  # EUP reciprocal (exact)

    out_ref[...] = jnp.where(
        is_logit, probs, jnp.where(is_value, z, 0.0)
    ).astype(out_ref.dtype)


def actor_critic_forward(x, params):
    """x: (B, state_dim) f32. params: dict of actor/critic weights (see init_params).

    Returns (action_probs (B, action_dim), state_values (B, 1)), matching the
    PyTorch ActorCritic.forward semantics.
    """
    B, state_dim = x.shape
    hidden = params["w1a"].shape[1]
    action_dim = params["w2a"].shape[1]
    n_out = action_dim + 1
    assert n_out <= OUT_LANES, "action_dim + 1 must fit in one 128-lane slab"

    # ---- fuse parameters (wrapper-side, cheap / XLA-fusable) ----
    w1 = jnp.concatenate([params["w1a"], params["w1c"]], axis=1)  # (S, 2H)
    b1 = jnp.concatenate([params["b1a"], params["b1c"]], axis=1)  # (1, 2H)
    w2 = jnp.zeros((2 * hidden, OUT_LANES), jnp.float32)          # block-diagonal
    w2 = w2.at[:hidden, :action_dim].set(params["w2a"])
    w2 = w2.at[hidden:, action_dim:n_out].set(params["w2c"])
    b2 = jnp.zeros((1, OUT_LANES), jnp.float32)
    b2 = b2.at[:, :action_dim].set(params["b2a"][0])
    b2 = b2.at[:, action_dim:n_out].set(params["b2c"][0])

    # ---- batch tiling: parallel grid over batch; weights stay VMEM-resident ----
    bt = min(128, ((B + 7) // 8) * 8)          # sublane-aligned batch tile
    b_pad = pl.cdiv(B, bt) * bt
    x_p = jnp.pad(x, ((0, b_pad - B), (0, 0))) if b_pad != B else x
    grid = (b_pad // bt,)

    out = pl.pallas_call(
        functools.partial(actor_critic_kernel, action_dim=action_dim),
        out_shape=jax.ShapeDtypeStruct((b_pad, OUT_LANES), jnp.float32),
        grid_spec=pltpu.PrefetchScalarGridSpec(
            num_scalar_prefetch=0,
            grid=grid,
            in_specs=[
                pl.BlockSpec((bt, state_dim), lambda i: (i, 0)),
                pl.BlockSpec((state_dim, 2 * hidden), lambda i: (0, 0)),  # resident
                pl.BlockSpec((1, 2 * hidden), lambda i: (0, 0)),          # resident
                pl.BlockSpec((2 * hidden, OUT_LANES), lambda i: (0, 0)),  # resident
                pl.BlockSpec((1, OUT_LANES), lambda i: (0, 0)),           # resident
            ],
            out_specs=pl.BlockSpec((bt, OUT_LANES), lambda i: (i, 0)),
        ),
        compiler_params=pltpu.CompilerParams(
            dimension_semantics=("parallel",),   # shards batch tiles across TCs on v7x
        ),
    )(x_p, w1, b1, w2, b2)

    probs = out[:B, :action_dim]
    values = out[:B, action_dim:n_out]
    return probs, values


def init_params(key, state_dim, action_dim, hidden=128):
    """Deterministic synthetic init (PyTorch-style uniform bounds), weights as (in, out)."""
    ks = jax.random.split(key, 8)

    def linear(kw, kb, fan_in, fan_out):
        bound = 1.0 / jnp.sqrt(fan_in)
        w = jax.random.uniform(kw, (fan_in, fan_out), jnp.float32, -bound, bound)
        b = jax.random.uniform(kb, (1, fan_out), jnp.float32, -bound, bound)
        return w, b

    w1a, b1a = linear(ks[0], ks[1], state_dim, hidden)
    w2a, b2a = linear(ks[2], ks[3], hidden, action_dim)
    w1c, b1c = linear(ks[4], ks[5], state_dim, hidden)
    w2c, b2c = linear(ks[6], ks[7], hidden, 1)
    return {
        "w1a": w1a, "b1a": b1a, "w2a": w2a, "b2a": b2a,
        "w1c": w1c, "b1c": b1c, "w2c": w2c, "b2c": b2c,
    }


def reference_forward(x, p):
    """Pure-JAX reference matching the PyTorch forward."""
    h_a = jnp.maximum(x @ p["w1a"] + p["b1a"], 0.0)
    logits = h_a @ p["w2a"] + p["b2a"]
    probs = jax.nn.softmax(logits, axis=-1)
    h_c = jnp.maximum(x @ p["w1c"] + p["b1c"], 0.0)
    values = h_c @ p["w2c"] + p["b2c"]
    return probs, values


if __name__ == "__main__":
    key = jax.random.PRNGKey(0)
    k_x, k_p = jax.random.split(key)

    batch, state_dim, action_dim = 8, 16, 4
    x = jax.random.normal(k_x, (batch, state_dim), dtype=jnp.float32)
    params = init_params(k_p, state_dim, action_dim)

    probs, values = actor_critic_forward(x, params)
    jax.block_until_ready((probs, values))

    ref_probs, ref_values = reference_forward(x, params)
    assert probs.shape == (batch, action_dim)
    assert values.shape == (batch, 1)
    assert jnp.allclose(probs, ref_probs, atol=1e-5, rtol=1e-5)
    assert jnp.allclose(values, ref_values, atol=1e-5, rtol=1e-5)
    assert jnp.allclose(jnp.sum(probs, axis=-1), 1.0, atol=1e-5)

    print("KERNEL_OK")
</pallas_src>

<mosaic_0001>
module attributes {stable_mosaic.version = 11 : i64} {
  func.func @actor_critic_kernel(%arg0: i32, %arg1: memref<8x16xf32, #tpu.memory_space<vmem>>, %arg2: memref<16x256xf32, #tpu.memory_space<vmem>>, %arg3: memref<1x256xf32, #tpu.memory_space<vmem>>, %arg4: memref<256x128xf32, #tpu.memory_space<vmem>>, %arg5: memref<1x128xf32, #tpu.memory_space<vmem>>, %arg6: memref<8x128xf32, #tpu.memory_space<vmem>>) attributes {dimension_semantics = [#tpu.dimension_semantics<parallel>], iteration_bounds = array<i64: 1>, scalar_prefetch = 0 : i64, scratch_operands = 0 : i64, tpu.core_type = #tpu.core_type<tc>, window_params = [{transform_indices = @transform_0, window_bounds = array<i64: 8, 16>}, {pipeline_mode = #tpu.pipeline_mode<synchronous>, transform_indices = @transform_1, window_bounds = array<i64: 16, 256>}, {pipeline_mode = #tpu.pipeline_mode<synchronous>, transform_indices = @transform_2, window_bounds = array<i64: 1, 256>}, {pipeline_mode = #tpu.pipeline_mode<synchronous>, transform_indices = @transform_3, window_bounds = array<i64: 256, 128>}, {pipeline_mode = #tpu.pipeline_mode<synchronous>, transform_indices = @transform_4, window_bounds = array<i64: 1, 128>}, {transform_indices = @transform_5, window_bounds = array<i64: 8, 128>}]} {
    %c0 = arith.constant 0 : index
    %c0_0 = arith.constant 0 : index
    %0 = vector.load %arg1[%c0, %c0_0] : memref<8x16xf32, #tpu.memory_space<vmem>>, vector<8x16xf32>
    %c0_1 = arith.constant 0 : index
    %c0_2 = arith.constant 0 : index
    %1 = vector.load %arg2[%c0_1, %c0_2] : memref<16x256xf32, #tpu.memory_space<vmem>>, vector<16x256xf32>
    %cst = arith.constant dense<0.000000e+00> : vector<8x256xf32>
    %2 = tpu.matmul %0, %1, %cst {dimension_numbers = #tpu.dot_dimension_numbers<[1], [0], [0], [1], [0, 0, 1, 1], [], []>} : vector<8x16xf32>, vector<16x256xf32>, vector<8x256xf32> -> vector<8x256xf32>
    %c0_3 = arith.constant 0 : index
    %c0_4 = arith.constant 0 : index
    %3 = vector.load %arg3[%c0_3, %c0_4] : memref<1x256xf32, #tpu.memory_space<vmem>>, vector<1x256xf32>
    %4 = vector.broadcast %3 : vector<1x256xf32> to vector<8x256xf32>
    %5 = arith.addf %2, %4 : vector<8x256xf32>
    %cst_5 = arith.constant 0.000000e+00 : f32
    %6 = vector.broadcast %cst_5 : f32 to vector<8x256xf32>
    %7 = arith.maximumf %5, %6 : vector<8x256xf32>
    %c0_6 = arith.constant 0 : index
    %c0_7 = arith.constant 0 : index
    %8 = vector.load %arg4[%c0_6, %c0_7] : memref<256x128xf32, #tpu.memory_space<vmem>>, vector<256x128xf32>
    %cst_8 = arith.constant dense<0.000000e+00> : vector<8x128xf32>
    %9 = tpu.matmul %7, %8, %cst_8 {dimension_numbers = #tpu.dot_dimension_numbers<[1], [0], [0], [1], [0, 0, 1, 1], [], []>} : vector<8x256xf32>, vector<256x128xf32>, vector<8x128xf32> -> vector<8x128xf32>
    %c0_9 = arith.constant 0 : index
    %c0_10 = arith.constant 0 : index
    %10 = vector.load %arg5[%c0_9, %c0_10] : memref<1x128xf32, #tpu.memory_space<vmem>>, vector<1x128xf32>
    %11 = vector.broadcast %10 : vector<1x128xf32> to vector<8x128xf32>
    %12 = arith.addf %9, %11 : vector<8x128xf32>
    %13 = tpu.iota {dimensions = array<i32: 1>} : vector<8x128xi32>
    %c4_i32 = arith.constant 4 : i32
    %14 = vector.broadcast %c4_i32 : i32 to vector<8x128xi32>
    %15 = arith.cmpi slt, %13, %14 : vector<8x128xi32>
    %c4_i32_11 = arith.constant 4 : i32
    %16 = vector.broadcast %c4_i32_11 : i32 to vector<8x128xi32>
    %17 = arith.cmpi eq, %13, %16 : vector<8x128xi32>
    %cst_12 = arith.constant 0xFF800000 : f32
    %18 = vector.broadcast %cst_12 : f32 to vector<8x128xf32>
    %19 = arith.select %15, %12, %18 : vector<8x128xi1>, vector<8x128xf32>
    %cst_13 = arith.constant dense<0xFF800000> : vector<8xf32>
    %20 = vector.multi_reduction <maximumf>, %19, %cst_13 [1] : vector<8x128xf32> to vector<8xf32>
    %21 = vector.shape_cast %20 : vector<8xf32> to vector<8x1xf32>
    %22 = vector.broadcast %21 : vector<8x1xf32> to vector<8x128xf32>
    %23 = arith.subf %12, %22 : vector<8x128xf32>
    %24 = math.exp %23 : vector<8x128xf32>
    %cst_14 = arith.constant 0.000000e+00 : f32
    %25 = vector.broadcast %cst_14 : f32 to vector<8x128xf32>
    %26 = arith.select %15, %24, %25 : vector<8x128xi1>, vector<8x128xf32>
    %cst_15 = arith.constant dense<0.000000e+00> : vector<8xf32>
    %27 = vector.multi_reduction <add>, %26, %cst_15 [1] : vector<8x128xf32> to vector<8xf32>
    %28 = vector.shape_cast %27 : vector<8xf32> to vector<8x1xf32>
    %29 = tpu.reciprocal %28 : vector<8x1xf32> -> vector<8x1xf32>
    %30 = vector.broadcast %29 : vector<8x1xf32> to vector<8x128xf32>
    %31 = arith.mulf %26, %30 : vector<8x128xf32>
    %cst_16 = arith.constant 0.000000e+00 : f32
    %32 = vector.broadcast %cst_16 : f32 to vector<8x128xf32>
    %33 = arith.select %17, %12, %32 : vector<8x128xi1>, vector<8x128xf32>
    %34 = arith.select %15, %31, %33 : vector<8x128xi1>, vector<8x128xf32>
    %c0_17 = arith.constant 0 : index
    %c0_18 = arith.constant 0 : index
    %35 = vector.load %arg6[%c0_17, %c0_18] : memref<8x128xf32, #tpu.memory_space<vmem>>, vector<8x128xf32>
    tpu.vector_store %arg6[%c0_17, %c0_18], %34 {strides = array<i32>} : memref<8x128xf32, #tpu.memory_space<vmem>>, vector<8x128xf32>,
    return
  }
  func.func @transform_0(%arg0: i32) -> (i32, i32) {
    %c0_i32 = arith.constant 0 : i32
    %c0_i32_0 = arith.constant 0 : i32
    return %arg0, %c0_i32 : i32, i32
  }
  func.func @transform_1(%arg0: i32) -> (i32, i32) {
    %c0_i32 = arith.constant 0 : i32
    %c0_i32_0 = arith.constant 0 : i32
    %c0_i32_1 = arith.constant 0 : i32
    return %c0_i32, %c0_i32_0 : i32, i32
  }
  func.func @transform_2(%arg0: i32) -> (i32, i32) {
    %c0_i32 = arith.constant 0 : i32
    %c0_i32_0 = arith.constant 0 : i32
    %c0_i32_1 = arith.constant 0 : i32
    return %c0_i32, %c0_i32_0 : i32, i32
  }
  func.func @transform_3(%arg0: i32) -> (i32, i32) {
    %c0_i32 = arith.constant 0 : i32
    %c0_i32_0 = arith.constant 0 : i32
    %c0_i32_1 = arith.constant 0 : i32
    return %c0_i32, %c0_i32_0 : i32, i32
  }
  func.func @transform_4(%arg0: i32) -> (i32, i32) {
    %c0_i32 = arith.constant 0 : i32
    %c0_i32_0 = arith.constant 0 : i32
    %c0_i32_1 = arith.constant 0 : i32
    return %c0_i32, %c0_i32_0 : i32, i32
  }
  func.func @transform_5(%arg0: i32) -> (i32, i32) {
    %c0_i32 = arith.constant 0 : i32
    %c0_i32_0 = arith.constant 0 : i32
    return %arg0, %c0_i32 : i32, i32
  }
}

</mosaic_0001>

<llo_original>
// kernel: tpu_custom_call.1
$region0: #{tpu_custom_call.1}
  #allocation0 [shape = 'u32[]', space=smem, size = 0x4, offset = 0x4, fixed_abs, tag = 'smem constant byte address 0x4 - core index']
  #allocation1 [shape = 'u32[72,128]{1,0:T(1,128)}', space=vmem, size = 0x9000, scoped, tag = 'internal scratch']
  %s0 = inlined_call_operand.hbm [shape: f32[8,16], index: 0, kind: input, shape index: {}]
  %s1 = inlined_call_operand.hbm [shape: f32[16,256], index: 1, kind: input, shape index: {}]
  %s2 = inlined_call_operand.hbm [shape: f32[1,256], index: 2, kind: input, shape index: {}]
  %s3 = inlined_call_operand.hbm [shape: f32[256,128], index: 3, kind: input, shape index: {}]
  %s4 = inlined_call_operand.vmem [shape: f32[1,128], index: 4, kind: input, shape index: {}]
  %s5 = inlined_call_operand.hbm [shape: f32[8,128], index: 5, kind: output, shape index: {}]
  %s6 = sld [smem:[#allocation0]]
  $region46: #{tpu_custom_call.1} parent=0
    _
  %s8 = ssub.s32 1, %s6
  %s9 = scalar_select 0, %s8, %s6
  $region1: #{tpu_custom_call.1} parent=0
    #allocation2 [shape = 'u8[4096]{0}', space=vmem, size = 0x1000, scoped, tag = 'input window, operand 0, single buffered']
    #allocation3 [shape = 's32[1]{0}', space=sflag, size = 0x4, scoped, tag = 'scoped memory for tpu_custom_call.1']
    #allocation4 [shape = 's32[1]{0}', space=sflag, size = 0x4, scoped, tag = 'scoped memory for tpu_custom_call.1']
    #allocation5 [shape = 'u8[16384]{0}', space=vmem, size = 0x4000, scoped, tag = 'input window, operand 1, single buffered']
    #allocation6 [shape = 's32[1]{0}', space=sflag, size = 0x4, scoped, tag = 'scoped memory for tpu_custom_call.1']
    #allocation7 [shape = 'u8[1024]{0}', space=vmem, size = 0x400, scoped, tag = 'input window, operand 2, single buffered']
    #allocation8 [shape = 'u8[131072]{0}', space=vmem, size = 0x20000, scoped, tag = 'input window, operand 3, single buffered']
    #allocation9 [shape = 's32[1]{0}', space=sflag, size = 0x4, scoped, tag = 'scoped memory for tpu_custom_call.1']
    #allocation10 [shape = 'u8[4096]{0}', space=vmem, size = 0x1000, scoped, tag = 'output window, operand 0, single buffered']
    %10 = vsyncpa [#allocation3], 0
    %11 = vsyncpa [#allocation6], 0
    %12 = vsyncpa [#allocation9], 0
    %13 = vsyncpa [#allocation4], 0
    // Predicated region
    $region2: #{tpu_custom_call.1} parent=1 // pred_check
      _
    $region3: #{tpu_custom_call.1} parent=1 // pred_check_branch
      %15 = sbr.rel (0) target = $region5
    $region4: #{tpu_custom_call.1} parent=1 // pred_region
      %17 = vsyncadd [#allocation3], 0
      %s19 = sshll.u32 %s0, 4
      %s20 = int_to_ptr.hbm [resolvable:$true] %s19
      %s21 = sshll.u32 [#allocation2], 4
      %s22 = int_to_ptr.vmem [resolvable:$true] %s21
      %24 = dma.hbm_to_vmem [thread:$0]  %s20, 128, %s22, [#allocation3]
    $region5: #{tpu_custom_call.1} parent=1 // pred_fallthru
      _
    // Predicated region
    $region6: #{tpu_custom_call.1} parent=1 // pred_check
      _
    $region7: #{tpu_custom_call.1} parent=1 // pred_check_branch
      %26 = sbr.rel (0) target = $region9
    $region8: #{tpu_custom_call.1} parent=1 // pred_region
      %28 = vsyncadd [#allocation6], 0
      %s29 = sshll.u32 %s1, 4
      %s30 = int_to_ptr.hbm [resolvable:$true] %s29
      %s31 = sshll.u32 [#allocation5], 4
      %s32 = int_to_ptr.vmem [resolvable:$true] %s31
      %37 = dma.hbm_to_vmem [thread:$0]  %s30, 512, %s32, [#allocation6], 256, 256, 16
    $region9: #{tpu_custom_call.1} parent=1 // pred_fallthru
      _
    // Predicated region
    $region10: #{tpu_custom_call.1} parent=1 // pred_check
      _
    $region11: #{tpu_custom_call.1} parent=1 // pred_check_branch
      %39 = sbr.rel (0) target = $region13
    $region12: #{tpu_custom_call.1} parent=1 // pred_region
      %41 = vsyncadd [#allocation6], 0
      %s43 = sshll.u32 %s2, 4
      %s44 = int_to_ptr.hbm [resolvable:$true] %s43
      %s45 = sshll.u32 [#allocation7], 4
      %s46 = int_to_ptr.vmem [resolvable:$true] %s45
      %48 = dma.hbm_to_vmem [thread:$0]  %s44, 32, %s46, [#allocation6]
    $region13: #{tpu_custom_call.1} parent=1 // pred_fallthru
      _
    // Predicated region
    $region14: #{tpu_custom_call.1} parent=1 // pred_check
      _
    $region15: #{tpu_custom_call.1} parent=1 // pred_check_branch
      %50 = sbr.rel (0) target = $region17
    $region16: #{tpu_custom_call.1} parent=1 // pred_region
      %52 = vsyncadd [#allocation9], 0
      %s53 = sshll.u32 %s3, 4
      %s54 = int_to_ptr.hbm [resolvable:$true] %s53
      %s55 = sshll.u32 [#allocation8], 4
      %s56 = int_to_ptr.vmem [resolvable:$true] %s55
      %61 = dma.hbm_to_vmem [thread:$0]  %s54, 4096, %s56, [#allocation9], 128, 128, 8
    $region17: #{tpu_custom_call.1} parent=1 // pred_fallthru
      _
    // Predicated region
    $region18: #{tpu_custom_call.1} parent=1 // pred_check
      _
    $region19: #{tpu_custom_call.1} parent=1 // pred_check_branch
      %63 = sbr.rel (0) target = $region21
    $region20: #{tpu_custom_call.1} parent=1 // pred_region
      _
    $region21: #{tpu_custom_call.1} parent=1 // pred_fallthru
      _
    // Predicated region
    $region22: #{tpu_custom_call.1} parent=1 // pred_check
      _
    $region23: #{tpu_custom_call.1} parent=1 // pred_check_branch
      %65 = sbr.rel (0) target = $region25
    $region24: #{tpu_custom_call.1} parent=1 // pred_region
      %67 = dma.done [#allocation3], 128
    $region25: #{tpu_custom_call.1} parent=1 // pred_fallthru
      _
    // Predicated region
    $region26: #{tpu_custom_call.1} parent=1 // pred_check
      _
    $region27: #{tpu_custom_call.1} parent=1 // pred_check_branch
      %69 = sbr.rel (0) target = $region29
    $region28: #{tpu_custom_call.1} parent=1 // pred_region
      %71 = dma.done [#allocation6], 512
    $region29: #{tpu_custom_call.1} parent=1 // pred_fallthru
      _
    // Predicated region
    $region30: #{tpu_custom_call.1} parent=1 // pred_check
      _
    $region31: #{tpu_custom_call.1} parent=1 // pred_check_branch
      %73 = sbr.rel (0) target = $region33
    $region32: #{tpu_custom_call.1} parent=1 // pred_region
      %75 = dma.done [#allocation6], 32
    $region33: #{tpu_custom_call.1} parent=1 // pred_fallthru
      _
    // Predicated region
    $region34: #{tpu_custom_call.1} parent=1 // pred_check
      _
    $region35: #{tpu_custom_call.1} parent=1 // pred_check_branch
      %77 = sbr.rel (0) target = $region37
    $region36: #{tpu_custom_call.1} parent=1 // pred_region
      %79 = dma.done [#allocation9], 4096
    $region37: #{tpu_custom_call.1} parent=1 // pred_fallthru
      _
    %v80 = vld [vmem:[#allocation2] sm:$0xff]
    %v81 = vld [vmem:[#allocation5] sm:$0xff]
    %v82 = vld [vmem:[#allocation5 + $0x8] sm:$0xff]
    %v83 = vld [vmem:[#allocation5 + $0x10] sm:$0xff]
    %v84 = vld [vmem:[#allocation5 + $0x18] sm:$0xff]
    %v85 = vld [vmem:[#allocation7] sm:$0x3]
    %v87 = vperm.slane %v85, 0
    %v88 = vperm.slane %v85, 1
    %vm91 = vcmask 130048
    %v93 = vsel %vm91, %v80, 0
    %95 = vmatpush.msra.mxu0 0.0
    %96 = vmatpush.msra.mxu0 0.0
    %97 = vmatpush.msra.mxu0 0.0
    %98 = vmatpush.msra.mxu0 0.0
    %99 = vmatpush.msra.mxu0 0.0
    %100 = vmatpush.msra.mxu0 0.0
    %101 = vmatpush.msra.mxu0 0.0
    %102 = vmatpush.msra.mxu0 0.0
    %103 = vmatpush.msra.mxu0 0.0
    %104 = vmatpush.msra.mxu0 0.0
    %105 = vmatpush.msra.mxu0 0.0
    %106 = vmatpush.msra.mxu0 0.0
    %107 = vmatpush.msra.mxu0 0.0
    %108 = vmatpush.msra.mxu0 0.0
    %109 = vmatpush.msra.mxu0 %v83
    %110 = vmatpush.msra.mxu0 %v81
    %111 = vmatmul.f32.gmra.mxu0 %v93
    %v112 = vpop.f32.mrf.mxu0
    %v113 = vadd.f32 %v87, %v112
    %114 = vdwg.mxu0
    %115 = vmatpush.msra.mxu0 0.0
    %116 = vmatpush.msra.mxu0 0.0
    %117 = vmatpush.msra.mxu0 0.0
    %118 = vmatpush.msra.mxu0 0.0
    %119 = vmatpush.msra.mxu0 0.0
    %120 = vmatpush.msra.mxu0 0.0
    %121 = vmatpush.msra.mxu0 0.0
    %122 = vmatpush.msra.mxu0 0.0
    %123 = vmatpush.msra.mxu0 0.0
    %124 = vmatpush.msra.mxu0 0.0
    %125 = vmatpush.msra.mxu0 0.0
    %126 = vmatpush.msra.mxu0 0.0
    %127 = vmatpush.msra.mxu0 0.0
    %128 = vmatpush.msra.mxu0 0.0
    %129 = vmatpush.msra.mxu0 %v84
    %130 = vmatpush.msra.mxu0 %v82
    %131 = vmatmul.f32.gmra.mxu0 %v93
    %v132 = vpop.f32.mrf.mxu0
    %v133 = vadd.f32 %v88, %v132
    %134 = vdwg.mxu0
    %v135 = vmax.f32 %v113, 0.0
    %v136 = vmax.f32 %v133, 0.0
    %v137 = vld [vmem:[#allocation8] sm:$0xff]
    %v138 = vld [vmem:[#allocation8 + $0x8] sm:$0xff]
    %v139 = vld [vmem:[#allocation8 + $0x10] sm:$0xff]
    %v140 = vld [vmem:[#allocation8 + $0x18] sm:$0xff]
    %v141 = vld [vmem:[#allocation8 + $0x20] sm:$0xff]
    %v142 = vld [vmem:[#allocation8 + $0x28] sm:$0xff]
    %v143 = vld [vmem:[#allocation8 + $0x30] sm:$0xff]
    %v144 = vld [vmem:[#allocation8 + $0x38] sm:$0xff]
    %v145 = vld [vmem:[#allocation8 + $0x40] sm:$0xff]
    %v146 = vld [vmem:[#allocation8 + $0x48] sm:$0xff]
    %v147 = vld [vmem:[#allocation8 + $0x50] sm:$0xff]
    %v148 = vld [vmem:[#allocation8 + $0x58] sm:$0xff]
    %v149 = vld [vmem:[#allocation8 + $0x60] sm:$0xff]
    %v150 = vld [vmem:[#allocation8 + $0x68] sm:$0xff]
    %v151 = vld [vmem:[#allocation8 + $0x70] sm:$0xff]
    %v152 = vld [vmem:[#allocation8 + $0x78] sm:$0xff]
    %v153 = vld [vmem:[#allocation8 + $0x80] sm:$0xff]
    %v154 = vld [vmem:[#allocation8 + $0x88] sm:$0xff]
    %v155 = vld [vmem:[#allocation8 + $0x90] sm:$0xff]
    %v156 = vld [vmem:[#allocation8 + $0x98] sm:$0xff]
    %v157 = vld [vmem:[#allocation8 + $0xa0] sm:$0xff]
    %v158 = vld [vmem:[#allocation8 + $0xa8] sm:$0xff]
    %v159 = vld [vmem:[#allocation8 + $0xb0] sm:$0xff]
    %v160 = vld [vmem:[#allocation8 + $0xb8] sm:$0xff]
    %v161 = vld [vmem:[#allocation8 + $0xc0] sm:$0xff]
    %v162 = vld [vmem:[#allocation8 + $0xc8] sm:$0xff]
    %v163 = vld [vmem:[#allocation8 + $0xd0] sm:$0xff]
    %v164 = vld [vmem:[#allocation8 + $0xd8] sm:$0xff]
    %v165 = vld [vmem:[#allocation8 + $0xe0] sm:$0xff]
    %v166 = vld [vmem:[#allocation8 + $0xe8] sm:$0xff]
    %v167 = vld [vmem:[#allocation8 + $0xf0] sm:$0xff]
    %v168 = vld [vmem:[#allocation8 + $0xf8] sm:$0xff]
    %v169 = vld [vmem:[%s4] sm:$0x1]
    %v171 = vperm.slane %v169, 0
    %173 = vmatpush.msra.mxu0 %v152
    %174 = vmatpush.msra.mxu0 %v151
    %175 = vmatpush.msra.mxu0 %v150
    %176 = vmatpush.msra.mxu0 %v149
    %177 = vmatpush.msra.mxu0 %v148
    %178 = vmatpush.msra.mxu0 %v147
    %179 = vmatpush.msra.mxu0 %v146
    %180 = vmatpush.msra.mxu0 %v145
    %181 = vmatpush.msra.mxu0 %v144
    %182 = vmatpush.msra.mxu0 %v143
    %183 = vmatpush.msra.mxu0 %v142
    %184 = vmatpush.msra.mxu0 %v141
    %185 = vmatpush.msra.mxu0 %v140
    %186 = vmatpush.msra.mxu0 %v139
    %187 = vmatpush.msra.mxu0 %v138
    %188 = vmatpush.msra.mxu0 %v137
    %189 = vmatmul.f32.gmra.mxu0 %v135
    %v190 = vpop.f32.mrf.mxu0
    %v191 = vadd.f32 %v171, %v190
    %192 = vdwg.mxu0
    %193 = vmatpush.msra.mxu0 %v168
    %194 = vmatpush.msra.mxu0 %v167
    %195 = vmatpush.msra.mxu0 %v166
    %196 = vmatpush.msra.mxu0 %v165
    %197 = vmatpush.msra.mxu0 %v164
    %198 = vmatpush.msra.mxu0 %v163
    %199 = vmatpush.msra.mxu0 %v162
    %200 = vmatpush.msra.mxu0 %v161
    %201 = vmatpush.msra.mxu0 %v160
    %202 = vmatpush.msra.mxu0 %v159
    %203 = vmatpush.msra.mxu0 %v158
    %204 = vmatpush.msra.mxu0 %v157
    %205 = vmatpush.msra.mxu0 %v156
    %206 = vmatpush.msra.mxu0 %v155
    %207 = vmatpush.msra.mxu0 %v154
    %208 = vmatpush.msra.mxu0 %v153
    %209 = vmatmul.f32.gmra.mxu0 %v136
    %v210 = vpop.f32.mrf.mxu0
    %v211 = vadd.f32 %v191, %v210
    %212 = vdwg.mxu0
    %v213 = vlaneseq
    %v214 = vand.u32 %v213, 127
    %vm215 = vcmp.lt.s32.totalorder %v214, 4
    %vm216 = vcmp.eq.s32.totalorder %v214, 4
    %v217 = vsel %vm215, %v211, -inf
    %218 = vmax.xlane.f32.xlu0 %v217
    %v219 = vpop.xlane.xlu0 %218
    %v220 = vsub.f32 %v211, %v219
    %v221 = vmul.f32 %v220, 1.442695
    %v222 = vpow.pop %v221
    %v223 = vsel %vm215, %v222, 0.0
    %224 = vadd.xlane.f32.xlu0 %v223
    %v225 = vpop.xlane.xlu0 %224
    %v226 = vrcp.pop %v225
    %v227 = vmul.f32 %v225, %v226
    %v228 = vsub.f32 1.0, %v227
    %v229 = vmul.f32 %v226, %v228
    %v230 = vadd.f32 %v226, %v229
    %vm231 = vweird.f32 %v225
    %vm232 = vweird.f32 %v226
    %vm233 = vmor %vm231, %vm232
    %v234 = vsel %vm233, %v226, %v230
    %v235 = vand.u32 2147483647, %v225
    %vm236 = vcmp.eq.f32.partialorder %v235, 8.507059e+37
    %v237 = vand.u32 %v225, 2147483648
    %v238 = vor.u32 1.1754944e-38, %v237
    %v239 = vsel %vm236, %v238, %v234
    %v240 = vmul.f32 %v223, %v239
    %v241 = vsel %vm216, %v211, 0.0
    %v242 = vsel %vm215, %v240, %v241
    %243 = vst [vmem:[#allocation10] sm:$0xff] %v242
    // Predicated region
    $region38: #{tpu_custom_call.1} parent=1 // pred_check
      _
    $region39: #{tpu_custom_call.1} parent=1 // pred_check_branch
      %245 = sbr.rel (0) target = $region41
    $region40: #{tpu_custom_call.1} parent=1 // pred_region
      %247 = vsyncadd [#allocation4], 0
      %s249 = sshll.u32 [#allocation10], 4
      %s250 = int_to_ptr.vmem [resolvable:$true] %s249
      %s251 = sshll.u32 %s5, 4
      %s252 = int_to_ptr.hbm [resolvable:$true] %s251
      %254 = dma.vmem_to_hbm [thread:$0]  %s250, 128, %s252, [#allocation4]
    $region41: #{tpu_custom_call.1} parent=1 // pred_fallthru
      _
    // Predicated region
    $region42: #{tpu_custom_call.1} parent=1 // pred_check
      _
    $region43: #{tpu_custom_call.1} parent=1 // pred_check_branch
      %256 = sbr.rel (0) target = $region45
    $region44: #{tpu_custom_call.1} parent=1 // pred_region
      %258 = dma.done [#allocation4], 128
    $region45: #{tpu_custom_call.1} parent=1 // pred_fallthru
      _
    %259 = vsyncpa [#allocation3], 1
    %260 = vsyncpa [#allocation6], 1
    %261 = vsyncpa [#allocation9], 1
    %262 = vsyncpa [#allocation4], 1

</llo_original>
